<compile_context>
chip_gen: v7x
topology: tpu7x:2x2x1
jax: 0.10.0
libtpu: 0.0.40
codegen_flags: <defaults>
</compile_context>

<pallas_src>
import math

import jax
import jax.numpy as jnp
from jax.experimental import pallas as pl
from jax.experimental.pallas import tpu as pltpu


def _round_up(x, m):
    return ((x + m - 1) // m) * m


def _pick_tile(padded_dim, max_tile, align):
    """Largest multiple of `align` that divides `padded_dim` and is <= max_tile."""
    best = align
    t = align
    limit = min(max_tile, padded_dim)
    while t <= limit:
        if padded_dim % t == 0:
            best = t
        t += align
    return best


def relu_linear_kernel(x_ref, w_ref, b_ref, o_ref, acc_ref):
    """x_ref: (tm, tk) compute dtype, w_ref: (tk, tn) compute dtype,
    b_ref: (1, tn) f32, o_ref: (tm, tn) out dtype,
    acc_ref: (tm, tn) f32 scratch, resident across the K grid axis."""
    k = pl.program_id(2)

    @pl.when(k == 0)
    def _init():
        # Seed the accumulator with the bias -> no separate add in the epilogue.
        acc_ref[...] = jnp.broadcast_to(b_ref[...], acc_ref.shape)

    acc_ref[...] += jnp.dot(
        x_ref[...], w_ref[...], preferred_element_type=jnp.float32
    )

    @pl.when(k == pl.num_programs(2) - 1)
    def _finalize():
        o_ref[...] = jnp.maximum(acc_ref[...], 0.0).astype(o_ref.dtype)


def relu_layer(x, w_t, b2d, n_out, *, tm=512, tn=512, tk=1024, out_dtype=None):
    """Fused Linear + ReLU.

    x:     (M, K)     activations (any float dtype; cast to w_t.dtype for MXU)
    w_t:   (Kp, Np)   weight, already transposed / cast / padded at init time
    b2d:   (1, Np)    f32 bias, already padded at init time
    n_out: logical out_features (<= Np)
    """
    M, K = x.shape
    Kp, Np = w_t.shape
    assert K <= Kp and n_out <= Np
    assert b2d.shape == (1, Np)
    if out_dtype is None:
        out_dtype = x.dtype
    cdtype = w_t.dtype                     # compute dtype (bf16 by default)
    itemsize = jnp.dtype(cdtype).itemsize
    out_itemsize = jnp.dtype(out_dtype).itemsize

    if x.dtype != cdtype:
        x = x.astype(cdtype)               # MXU-rate inputs; acc stays f32

    # dtype-dependent sublane multiple: 8 (f32) / 16 (bf16) / 32 (8-bit)
    sub = {1: 32, 2: 16}.get(itemsize, 8)
    Mp = _round_up(M, sub)

    # Skinny-M (inference-style batch): weight-streaming bound -> whole M in
    # one tile, grow tn/tk so weight DMAs are fewer and larger.
    if Mp <= 256:
        tm, tn, tk = Mp, max(tn, 1024), max(tk, 1024)

    tm = _pick_tile(Mp, tm, sub)
    tn = _pick_tile(Np, tn, 128)           # lane-dense output tiles
    tk = _pick_tile(Kp, tk, 128)

    # Per-call padding touches only x (cheap; none at all when M % sub == 0
    # and in_features is already a multiple of 128).
    if (Mp, Kp) != (M, K):
        x = jnp.pad(x, ((0, Mp - M), (0, Kp - K)))

    grid = (Mp // tm, Np // tn, Kp // tk)

    # Double-buffered inputs/outputs + resident f32 accumulator; cap at 64 MiB
    # so the same config is safe on v7x (64 MiB VMEM / TensorCore).
    work = (2 * (tm * tk + tk * tn) * itemsize
            + 2 * tn * 4
            + 2 * tm * tn * out_itemsize
            + tm * tn * 4)
    vmem_limit = min(max(int(1.5 * work) + (4 << 20), 32 << 20), 64 << 20)

    cost = pl.CostEstimate(
        flops=2 * Mp * Np * Kp + Mp * Np,
        transcendentals=0,
        bytes_accessed=int(Mp * Kp * itemsize + Kp * Np * itemsize
                           + Np * 4 + Mp * Np * out_itemsize),
    )

    out = pl.pallas_call(
        relu_linear_kernel,
        out_shape=jax.ShapeDtypeStruct((Mp, Np), out_dtype),
        grid_spec=pltpu.PrefetchScalarGridSpec(
            num_scalar_prefetch=0,
            grid=grid,
            in_specs=[
                # If profiling shows exposed DMA at large K, add
                # pipeline_mode=pl.Buffered(3) to the x / w specs.
                pl.BlockSpec((tm, tk), lambda i, j, k: (i, k)),   # x tile
                pl.BlockSpec((tk, tn), lambda i, j, k: (k, j)),   # w tile
                pl.BlockSpec((1, tn), lambda i, j, k: (0, j)),    # bias, K-resident
            ],
            out_specs=pl.BlockSpec((tm, tn), lambda i, j, k: (i, j)),
            scratch_shapes=[pltpu.VMEM((tm, tn), jnp.float32)],
        ),
        compiler_params=pltpu.CompilerParams(
            dimension_semantics=("parallel", "parallel", "arbitrary"),
            vmem_limit_bytes=vmem_limit,
        ),
        cost_estimate=cost,
    )(x, w_t, b2d)

    if (Mp, Np) != (M, n_out):
        out = out[:M, :n_out]
    return out


def init_relu_layer_params(key, in_features, out_features, *,
                           param_dtype=jnp.bfloat16):
    """Mimics nn.Linear default init.  The weight is returned pre-transposed
    (K, N), pre-cast to the compute dtype (bf16 by default; on v7x fp8 would
    be the next step) and pre-padded to 128-multiples, so no per-call
    transpose / cast / pad of parameters is ever needed.  Bias stays f32."""
    kw, kb = jax.random.split(key)
    bound_w = math.sqrt(3.0) / math.sqrt(in_features)   # kaiming_uniform(a=sqrt(5))
    weight = jax.random.uniform(kw, (out_features, in_features), jnp.float32,
                                -bound_w, bound_w)
    bound_b = 1.0 / math.sqrt(in_features)
    bias = jax.random.uniform(kb, (out_features,), jnp.float32, -bound_b, bound_b)

    Kp = _round_up(in_features, 128)
    Np = _round_up(out_features, 128)
    w_t = jnp.pad(weight.T.astype(param_dtype),
                  ((0, Kp - in_features), (0, Np - out_features)))
    b2d = jnp.pad(bias, (0, Np - out_features)).reshape(1, Np)
    return w_t, b2d, out_features


if __name__ == "__main__":
    key = jax.random.PRNGKey(0)
    k_x, k_p, k_x2, k_p2 = jax.random.split(key, 4)

    # --- small shape consistent with the module (batch=8, in=32, out=64) ---
    batch, in_features, out_features = 8, 32, 64
    x = jax.random.normal(k_x, (batch, in_features), jnp.float32)
    w_t, b2d, n_out = init_relu_layer_params(k_p, in_features, out_features)

    out = jax.block_until_ready(relu_layer(x, w_t, b2d, n_out))
    xr = x.astype(jnp.bfloat16).astype(jnp.float32)
    wr = w_t[:in_features, :out_features].astype(jnp.float32)
    ref = jnp.maximum(xr @ wr + b2d[0, :out_features], 0.0)
    assert out.shape == (batch, out_features)
    assert out.dtype == x.dtype
    assert jnp.allclose(out, ref, atol=1e-2, rtol=1e-2), \
        float(jnp.max(jnp.abs(out - ref)))

    # --- larger shape exercising the (M, N, K) grid with K accumulation ---
    M2, K2, N2 = 384, 1536, 1024
    x2 = jax.random.normal(k_x2, (M2, K2), jnp.float32)
    w_t2, b2d2, n_out2 = init_relu_layer_params(k_p2, K2, N2)

    out2 = jax.block_until_ready(relu_layer(x2, w_t2, b2d2, n_out2))
    xr2 = x2.astype(jnp.bfloat16).astype(jnp.float32)
    wr2 = w_t2[:K2, :N2].astype(jnp.float32)
    ref2 = jnp.maximum(xr2 @ wr2 + b2d2[0, :N2], 0.0)
    assert out2.shape == (M2, N2)
    assert jnp.allclose(out2, ref2, atol=3e-2, rtol=3e-2), \
        float(jnp.max(jnp.abs(out2 - ref2)))

    print("KERNEL_OK")
</pallas_src>

<mosaic_0001>
module attributes {stable_mosaic.version = 11 : i64} {
  func.func @relu_linear_kernel(%arg0: i32, %arg1: i32, %arg2: i32, %arg3: memref<16x128xbf16, #tpu.memory_space<vmem>>, %arg4: memref<128x128xbf16, #tpu.memory_space<vmem>>, %arg5: memref<1x128xf32, #tpu.memory_space<vmem>>, %arg6: memref<16x128xf32, #tpu.memory_space<vmem>>, %arg7: memref<16x128xf32, #tpu.memory_space<vmem>>) attributes {dimension_semantics = [#tpu.dimension_semantics<parallel>, #tpu.dimension_semantics<parallel>, #tpu.dimension_semantics<arbitrary>], iteration_bounds = array<i64: 1, 1, 1>, scalar_prefetch = 0 : i64, scratch_operands = 1 : i64, tpu.core_type = #tpu.core_type<tc>, window_params = [{transform_indices = @transform_0, window_bounds = array<i64: 16, 128>}, {transform_indices = @transform_1, window_bounds = array<i64: 128, 128>}, {transform_indices = @transform_2, window_bounds = array<i64: 1, 128>}, {transform_indices = @transform_3, window_bounds = array<i64: 16, 128>}]} {
    %c0_i32 = arith.constant 0 : i32
    %0 = arith.cmpi eq, %arg2, %c0_i32 : i32
    %1 = arith.extui %0 : i1 to i32
    %c0_i32_0 = arith.constant 0 : i32
    %2 = arith.cmpi ne, %1, %c0_i32_0 : i32
    scf.if %2 {
      %c0_10 = arith.constant 0 : index
      %c0_11 = arith.constant 0 : index
      %12 = vector.load %arg5[%c0_10, %c0_11] : memref<1x128xf32, #tpu.memory_space<vmem>>, vector<1x128xf32>
      %13 = vector.shape_cast %12 : vector<1x128xf32> to vector<1x128xf32>
      %14 = vector.broadcast %13 : vector<1x128xf32> to vector<16x128xf32>
      %c0_12 = arith.constant 0 : index
      %c0_13 = arith.constant 0 : index
      %15 = vector.load %arg7[%c0_12, %c0_13] : memref<16x128xf32, #tpu.memory_space<vmem>>, vector<16x128xf32>
      tpu.vector_store %arg7[%c0_12, %c0_13], %14 {strides = array<i32>} : memref<16x128xf32, #tpu.memory_space<vmem>>, vector<16x128xf32>,
    } else {
    }
    %c0 = arith.constant 0 : index
    %c0_1 = arith.constant 0 : index
    %3 = vector.load %arg7[%c0, %c0_1] : memref<16x128xf32, #tpu.memory_space<vmem>>, vector<16x128xf32>
    %c0_2 = arith.constant 0 : index
    %c0_3 = arith.constant 0 : index
    %4 = vector.load %arg3[%c0_2, %c0_3] : memref<16x128xbf16, #tpu.memory_space<vmem>>, vector<16x128xbf16>
    %c0_4 = arith.constant 0 : index
    %c0_5 = arith.constant 0 : index
    %5 = vector.load %arg4[%c0_4, %c0_5] : memref<128x128xbf16, #tpu.memory_space<vmem>>, vector<128x128xbf16>
    %cst = arith.constant dense<0.000000e+00> : vector<16x128xf32>
    %6 = tpu.matmul %4, %5, %cst {dimension_numbers = #tpu.dot_dimension_numbers<[1], [0], [0], [1], [0, 0, 1, 1], [], []>} : vector<16x128xbf16>, vector<128x128xbf16>, vector<16x128xf32> -> vector<16x128xf32>
    %7 = arith.addf %3, %6 : vector<16x128xf32>
    %c0_6 = arith.constant 0 : index
    %c0_7 = arith.constant 0 : index
    %8 = vector.load %arg7[%c0_6, %c0_7] : memref<16x128xf32, #tpu.memory_space<vmem>>, vector<16x128xf32>
    tpu.vector_store %arg7[%c0_6, %c0_7], %7 {strides = array<i32>} : memref<16x128xf32, #tpu.memory_space<vmem>>, vector<16x128xf32>,
    %c0_i32_8 = arith.constant 0 : i32
    %9 = arith.cmpi eq, %arg2, %c0_i32_8 : i32
    %10 = arith.extui %9 : i1 to i32
    %c0_i32_9 = arith.constant 0 : i32
    %11 = arith.cmpi ne, %10, %c0_i32_9 : i32
    scf.if %11 {
      %c0_10 = arith.constant 0 : index
      %c0_11 = arith.constant 0 : index
      %12 = vector.load %arg7[%c0_10, %c0_11] : memref<16x128xf32, #tpu.memory_space<vmem>>, vector<16x128xf32>
      %cst_12 = arith.constant 0.000000e+00 : f32
      %13 = vector.broadcast %cst_12 : f32 to vector<16x128xf32>
      %14 = arith.maximumf %12, %13 : vector<16x128xf32>
      %c0_13 = arith.constant 0 : index
      %c0_14 = arith.constant 0 : index
      %15 = vector.load %arg6[%c0_13, %c0_14] : memref<16x128xf32, #tpu.memory_space<vmem>>, vector<16x128xf32>
      tpu.vector_store %arg6[%c0_13, %c0_14], %14 {strides = array<i32>} : memref<16x128xf32, #tpu.memory_space<vmem>>, vector<16x128xf32>,
    } else {
    }
    return
  }
  func.func @transform_0(%arg0: i32, %arg1: i32, %arg2: i32) -> (i32, i32) {
    %c0_i32 = arith.constant 0 : i32
    return %arg0, %arg2 : i32, i32
  }
  func.func @transform_1(%arg0: i32, %arg1: i32, %arg2: i32) -> (i32, i32) {
    %c0_i32 = arith.constant 0 : i32
    return %arg2, %arg1 : i32, i32
  }
  func.func @transform_2(%arg0: i32, %arg1: i32, %arg2: i32) -> (i32, i32) {
    %c0_i32 = arith.constant 0 : i32
    %c0_i32_0 = arith.constant 0 : i32
    return %c0_i32, %arg1 : i32, i32
  }
  func.func @transform_3(%arg0: i32, %arg1: i32, %arg2: i32) -> (i32, i32) {
    %c0_i32 = arith.constant 0 : i32
    return %arg0, %arg1 : i32, i32
  }
}

</mosaic_0001>

<llo_original>
// kernel: tpu_custom_call.1
$region0: #{tpu_custom_call.1}
  #allocation0 [shape = 'u32[]', space=smem, size = 0x4, offset = 0x4, fixed_abs, tag = 'smem constant byte address 0x4 - core index']
  #allocation1 [shape = 'u32[144,128]{1,0:T(1,128)}', space=vmem, size = 0x12000, scoped, tag = 'internal scratch']
  #allocation2 [shape = 'f32[16,128]{1,0:T(8,128)}', space=vmem, size = 0x2000, scoped, tag = 'scratch operand']
  %s0 = inlined_call_operand.hbm [shape: bf16[16,128], index: 0, kind: input, shape index: {}]
  %s1 = inlined_call_operand.hbm [shape: bf16[128,128], index: 1, kind: input, shape index: {}]
  %s2 = inlined_call_operand.vmem [shape: f32[1,128], index: 2, kind: input, shape index: {}]
  %s3 = inlined_call_operand.hbm [shape: f32[16,128], index: 3, kind: output, shape index: {}]
  %s4 = sld [smem:[#allocation0]]
  $region38: #{tpu_custom_call.1} parent=0
    _
  %s6 = ssub.s32 1, %s4
  %s7 = scalar_select 0, %s6, %s4
  $region1: #{tpu_custom_call.1} parent=0
    #allocation3 [shape = 'u8[4096]{0}', space=vmem, size = 0x1000, scoped, tag = 'input window, operand 0, single buffered']
    #allocation4 [shape = 's32[1]{0}', space=sflag, size = 0x4, scoped, tag = 'scoped memory for tpu_custom_call.1']
    #allocation5 [shape = 's32[1]{0}', space=sflag, size = 0x4, scoped, tag = 'scoped memory for tpu_custom_call.1']
    #allocation6 [shape = 'u8[32768]{0}', space=vmem, size = 0x8000, scoped, tag = 'input window, operand 1, single buffered']
    #allocation7 [shape = 's32[1]{0}', space=sflag, size = 0x4, scoped, tag = 'scoped memory for tpu_custom_call.1']
    #allocation8 [shape = 'u8[8192]{0}', space=vmem, size = 0x2000, scoped, tag = 'output window, operand 0, single buffered']
    %8 = vsyncpa [#allocation4], 0
    %9 = vsyncpa [#allocation7], 0
    %10 = vsyncpa [#allocation5], 0
    // Predicated region
    $region2: #{tpu_custom_call.1} parent=1 // pred_check
      _
    $region3: #{tpu_custom_call.1} parent=1 // pred_check_branch
      %12 = sbr.rel (0) target = $region5
    $region4: #{tpu_custom_call.1} parent=1 // pred_region
      %s14 = ssub.s32 128, 128
      %15 = vsyncadd [#allocation4], %s14
      %s16 = sshll.u32 [#allocation3], 4
      %s17 = int_to_ptr.vmem [resolvable:$true] %s16
      %22 = dma.hbm_to_vmem [thread:$0]  %s0, 128, %s17, [#allocation4], 64, 64, 4
    $region5: #{tpu_custom_call.1} parent=1 // pred_fallthru
      _
    // Predicated region
    $region6: #{tpu_custom_call.1} parent=1 // pred_check
      _
    $region7: #{tpu_custom_call.1} parent=1 // pred_check_branch
      %24 = sbr.rel (0) target = $region9
    $region8: #{tpu_custom_call.1} parent=1 // pred_region
      %s26 = ssub.s32 1024, 1024
      %27 = vsyncadd [#allocation7], %s26
      %s28 = sshll.u32 [#allocation6], 4
      %s29 = int_to_ptr.vmem [resolvable:$true] %s28
      %34 = dma.hbm_to_vmem [thread:$0]  %s1, 1024, %s29, [#allocation7], 64, 64, 4
    $region9: #{tpu_custom_call.1} parent=1 // pred_fallthru
      _
    // Predicated region
    $region10: #{tpu_custom_call.1} parent=1 // pred_check
      _
    $region11: #{tpu_custom_call.1} parent=1 // pred_check_branch
      %36 = sbr.rel (0) target = $region13
    $region12: #{tpu_custom_call.1} parent=1 // pred_region
      _
    $region13: #{tpu_custom_call.1} parent=1 // pred_fallthru
      _
    // Predicated region
    $region14: #{tpu_custom_call.1} parent=1 // pred_check
      _
    $region15: #{tpu_custom_call.1} parent=1 // pred_check_branch
      %38 = sbr.rel (0) target = $region17
    $region16: #{tpu_custom_call.1} parent=1 // pred_region
      %39 = dma.done [#allocation4], 128
    $region17: #{tpu_custom_call.1} parent=1 // pred_fallthru
      _
    // Predicated region
    $region18: #{tpu_custom_call.1} parent=1 // pred_check
      _
    $region19: #{tpu_custom_call.1} parent=1 // pred_check_branch
      %41 = sbr.rel (0) target = $region21
    $region20: #{tpu_custom_call.1} parent=1 // pred_region
      %42 = dma.done [#allocation7], 1024
    $region21: #{tpu_custom_call.1} parent=1 // pred_fallthru
      _
    %p44 = scmp.eq.s32.totalorder 0, 0
    // Predicated region
    $region22: #{tpu_custom_call.1} parent=1 // pred_check
      %p45 = pneg %p44
    $region23: #{tpu_custom_call.1} parent=1 // pred_check_branch
      %47 = sbr.rel (%p45) target = $region25
    $region24: #{tpu_custom_call.1} parent=1 // pred_region
      %v48 = vld [vmem:[%s2] sm:$0x1]
      %v50 = vlaneseq
      %v51 = vshrl.u32 %v50, 7
      %v52 = vsub.s32 0, %v51
      %v53 = vrot.slane %v48, %v52
      %55 = vst [vmem:[#allocation2] sm:$0xff] %v53
      %56 = vst [vmem:[#allocation2 + $0x8] sm:$0xff] %v53
    $region25: #{tpu_custom_call.1} parent=1 // pred_fallthru
      _
    %v57 = vld [vmem:[#allocation2] sm:$0xff]
    %v58 = vld [vmem:[#allocation2 + $0x8] sm:$0xff]
    %v59 = vld [vmem:[#allocation3] sm:$0xf]
    %v60 = vld [vmem:[#allocation3 + $0x4] sm:$0xf]
    %v61 = vld [vmem:[#allocation6] sm:$0xf]
    %v62 = vld [vmem:[#allocation6 + $0x4] sm:$0xf]
    %v63 = vld [vmem:[#allocation6 + $0x8] sm:$0xf]
    %v64 = vld [vmem:[#allocation6 + $0xc] sm:$0xf]
    %v65 = vld [vmem:[#allocation6 + $0x10] sm:$0xf]
    %v66 = vld [vmem:[#allocation6 + $0x14] sm:$0xf]
    %v67 = vld [vmem:[#allocation6 + $0x18] sm:$0xf]
    %v68 = vld [vmem:[#allocation6 + $0x1c] sm:$0xf]
    %v69 = vld [vmem:[#allocation6 + $0x20] sm:$0xf]
    %v70 = vld [vmem:[#allocation6 + $0x24] sm:$0xf]
    %v71 = vld [vmem:[#allocation6 + $0x28] sm:$0xf]
    %v72 = vld [vmem:[#allocation6 + $0x2c] sm:$0xf]
    %v73 = vld [vmem:[#allocation6 + $0x30] sm:$0xf]
    %v74 = vld [vmem:[#allocation6 + $0x34] sm:$0xf]
    %v75 = vld [vmem:[#allocation6 + $0x38] sm:$0xf]
    %v76 = vld [vmem:[#allocation6 + $0x3c] sm:$0xf]
    %v79 = vunpack.c.l.b16 %v59
    %v80 = vunpack.c.l.b16 %v60
    %v81 = vpack.c.b16 %v80, %v79
    %v99 = vunpack.c.l.b16 %v61
    %v100 = vunpack.c.l.b16 %v62
    %v101 = vunpack.c.l.b16 %v63
    %v102 = vunpack.c.l.b16 %v64
    %v103 = vunpack.c.l.b16 %v65
    %v104 = vunpack.c.l.b16 %v66
    %v105 = vunpack.c.l.b16 %v67
    %v106 = vunpack.c.l.b16 %v68
    %v107 = vunpack.c.l.b16 %v69
    %v108 = vunpack.c.l.b16 %v70
    %v109 = vunpack.c.l.b16 %v71
    %v110 = vunpack.c.l.b16 %v72
    %v111 = vunpack.c.l.b16 %v73
    %v112 = vunpack.c.l.b16 %v74
    %v113 = vunpack.c.l.b16 %v75
    %v114 = vunpack.c.l.b16 %v76
    %v115 = vpack.c.b16 %v100, %v99
    %v116 = vpack.c.b16 %v102, %v101
    %v117 = vpack.c.b16 %v104, %v103
    %v118 = vpack.c.b16 %v106, %v105
    %v119 = vpack.c.b16 %v108, %v107
    %v120 = vpack.c.b16 %v110, %v109
    %v121 = vpack.c.b16 %v112, %v111
    %v122 = vpack.c.b16 %v114, %v113
    %131 = vmatprep.subr.bf16.mxu0 0
    %132 = vmatpush1.bf16.msra.mxu0 %v115
    %133 = vmatprep.subr.bf16.mxu0 0
    %134 = vmatpush1.bf16.msra.mxu0 %v116
    %135 = vmatprep.subr.bf16.mxu0 0
    %136 = vmatpush1.bf16.msra.mxu0 %v117
    %137 = vmatprep.subr.bf16.mxu0 0
    %138 = vmatpush1.bf16.msra.mxu0 %v118
    %139 = vmatprep.subr.bf16.mxu0 0
    %140 = vmatpush1.bf16.msra.mxu0 %v119
    %141 = vmatprep.subr.bf16.mxu0 0
    %142 = vmatpush1.bf16.msra.mxu0 %v120
    %143 = vmatprep.subr.bf16.mxu0 0
    %144 = vmatpush1.bf16.msra.mxu0 %v121
    %145 = vmatprep.subr.bf16.mxu0 0
    %146 = vmatpush1.bf16.msra.mxu0 %v122
    %147 = vmatprep.subr.bf16.mxu0 0
    %148 = vmatpush1.bf16.msra.mxu0 0
    %149 = vmatprep.subr.bf16.mxu0 0
    %150 = vmatpush1.bf16.msra.mxu0 0
    %151 = vmatprep.subr.bf16.mxu0 0
    %152 = vmatpush1.bf16.msra.mxu0 0
    %153 = vmatprep.subr.bf16.mxu0 0
    %154 = vmatpush1.bf16.msra.mxu0 0
    %155 = vmatprep.subr.bf16.mxu0 0
    %156 = vmatpush1.bf16.msra.mxu0 0
    %157 = vmatprep.subr.bf16.mxu0 0
    %158 = vmatpush1.bf16.msra.mxu0 0
    %159 = vmatprep.subr.bf16.mxu0 0
    %160 = vmatpush1.bf16.msra.mxu0 0
    %161 = vmatprep.subr.bf16.mxu0 0
    %162 = vmatpush1.bf16.msra.mxu0 0
    %163 = vmatprep.mubr.bf16.mxu0 0
    %164 = vmatmul.mubr.bf16.gmra.mrb[0].mxu0 %v81
    %v165 = vpop.f32.mrb[0].mxu0
    %v166 = vadd.f32 0.0, %v165
    %v167 = vpop.f32.mrb[0].mxu0
    %v168 = vpop.f32.mrb[0].mxu0
    %v169 = vadd.f32 0.0, %v168
    %v170 = vpop.f32.mrb[0].mxu0
    %171 = vdwg.mxu0
    %v172 = vadd.f32 %v57, %v166
    %v173 = vadd.f32 %v58, %v169
    %174 = vst [vmem:[#allocation2] sm:$0xff] %v172
    %175 = vst [vmem:[#allocation2 + $0x8] sm:$0xff] %v173
    // Predicated region
    $region26: #{tpu_custom_call.1} parent=1 // pred_check
      %p176 = pneg %p44
    $region27: #{tpu_custom_call.1} parent=1 // pred_check_branch
      %178 = sbr.rel (%p176) target = $region29
    $region28: #{tpu_custom_call.1} parent=1 // pred_region
      %v179 = vld [vmem:[#allocation2] sm:$0xff]
      %v180 = vld [vmem:[#allocation2 + $0x8] sm:$0xff]
      %v181 = vmax.f32 %v179, 0.0
      %v182 = vmax.f32 %v180, 0.0
      %183 = vst [vmem:[#allocation8] sm:$0xff] %v181
      %184 = vst [vmem:[#allocation8 + $0x8] sm:$0xff] %v182
    $region29: #{tpu_custom_call.1} parent=1 // pred_fallthru
      _
    // Predicated region
    $region30: #{tpu_custom_call.1} parent=1 // pred_check
      _
    $region31: #{tpu_custom_call.1} parent=1 // pred_check_branch
      %186 = sbr.rel (0) target = $region33
    $region32: #{tpu_custom_call.1} parent=1 // pred_region
      %s188 = ssub.s32 256, 256
      %189 = vsyncadd [#allocation5], %s188
      %s190 = sshll.u32 [#allocation8], 4
      %s191 = int_to_ptr.vmem [resolvable:$true] %s190
      %196 = dma.vmem_to_hbm [thread:$0]  %s191, 256, %s3, [#allocation5], 128, 128, 8
    $region33: #{tpu_custom_call.1} parent=1 // pred_fallthru
      _
    // Predicated region
    $region34: #{tpu_custom_call.1} parent=1 // pred_check
      _
    $region35: #{tpu_custom_call.1} parent=1 // pred_check_branch
      %198 = sbr.rel (0) target = $region37
    $region36: #{tpu_custom_call.1} parent=1 // pred_region
      %199 = dma.done [#allocation5], 256
    $region37: #{tpu_custom_call.1} parent=1 // pred_fallthru
      _
    %200 = vsyncpa [#allocation4], 1
    %201 = vsyncpa [#allocation7], 1
    %202 = vsyncpa [#allocation5], 1

</llo_original>
